<compile_context>
chip_gen: v7x
topology: tpu7x:2x2x1
jax: 0.10.0
libtpu: 0.0.40
codegen_flags: <defaults>
</compile_context>

<pallas_src>
import functools

import jax
import jax.numpy as jnp
from jax.experimental import pallas as pl
from jax.experimental.pallas import tpu as pltpu


def _make_lstm_kernel(T, t_chunk, H, mxu_dtype, mask_needed):
    """Builds the per-(batch-block, time-chunk) recurrence kernel."""

    def kernel(gx_ref, whh_ref, h_out_ref, h_scr, c_scr):
        # gx_ref : (t_chunk, B_BLK, 4H) f32  -- streamed input projection
        # whh_ref: (H, 4H) mxu_dtype         -- recurrent weight, resident
        # h_out  : (B_BLK, H)                -- final hidden state
        # h_scr/c_scr: (B_BLK, H) f32        -- state, persists across chunks
        t_blk = pl.program_id(1)
        b_blk = gx_ref.shape[1]

        @pl.when(t_blk == 0)
        def _():
            h_scr[...] = jnp.zeros_like(h_scr)
            c_scr[...] = jnp.zeros_like(c_scr)

        if H % 128 != 0:
            # All 4H gate lanes share vregs: blend tanh into the g-gate
            # columns with a lane mask hoisted out of the step loop (cheaper
            # than 4 lane-unaligned activation slices at small H).
            lane = jax.lax.broadcasted_iota(jnp.int32, (b_blk, 4 * H), 1)
            g_cols = (lane >= 2 * H) & (lane < 3 * H)

        def step(t, carry):
            h, c = carry
            # Recurrent projection only; W_hh^T indexed from its VMEM ref
            # every step (never hoisted into vregs -> no spills at large H).
            gates = gx_ref[t] + jnp.dot(
                h.astype(mxu_dtype), whh_ref[...],
                preferred_element_type=jnp.float32)

            if H % 128 == 0:
                # Lane-aligned slices: run each transcendental only where
                # needed (3H sigmoid + H tanh instead of 4H of each).
                sig_if = jax.nn.sigmoid(gates[:, : 2 * H])
                i = sig_if[:, :H]
                f = sig_if[:, H:]
                g = jnp.tanh(gates[:, 2 * H: 3 * H])
                o = jax.nn.sigmoid(gates[:, 3 * H:])
            else:
                act = jnp.where(g_cols, jnp.tanh(gates), jax.nn.sigmoid(gates))
                i = act[:, 0 * H: 1 * H]
                f = act[:, 1 * H: 2 * H]
                g = act[:, 2 * H: 3 * H]
                o = act[:, 3 * H: 4 * H]

            c_new = f * c + i * g
            h_new = o * jnp.tanh(c_new)

            if mask_needed:
                # Padded timesteps (T not a multiple of t_chunk) are no-ops.
                valid = (t_blk * t_chunk + t) < T
                h_new = jnp.where(valid, h_new, h)
                c_new = jnp.where(valid, c_new, c)
            return h_new, c_new

        h_n, c_n = jax.lax.fori_loop(
            0, t_chunk, step, (h_scr[...], c_scr[...]),
            unroll=min(t_chunk, 8))        # bounded unroll: no vreg blowup

        h_scr[...] = h_n
        c_scr[...] = c_n

        @pl.when(t_blk == pl.num_programs(1) - 1)
        def _():
            h_out_ref[...] = h_n.astype(h_out_ref.dtype)

    return kernel


def lstm_encoder_last(x, w_ih, w_hh, b_ih, b_hh, *, t_chunk=64,
                      mxu_dtype=jnp.bfloat16):
    """LSTMEncoder(embd_method='last') forward.

    x: (B, T, input_size), batch_first like PyTorch.  Returns (B, hidden).
    """
    B, T, I = x.shape
    H = w_hh.shape[1]
    assert w_ih.shape == (4 * H, I) and w_hh.shape == (4 * H, H)
    out_dtype = x.dtype

    if T == 0:
        # Empty sequence: h_n stays at the zero initial state.
        return jnp.zeros((B, H), out_dtype)

    # Pad batch to the f32 sublane tile.
    Bp = max(8, ((B + 7) // 8) * 8)

    # Megacore batch split (v7x: 2 TCs); only when the padded batch is big
    # enough for two 8-row-aligned blocks.  Tiny/latency-bound B stays at 1.
    num_b_blocks = 2 if (Bp >= 16 and Bp % 16 == 0) else 1
    b_blk = Bp // num_b_blocks

    # Time-chunk derived from a ~16 MiB double-buffered input budget so the
    # pipelined gates_x tile fits v5e's 16 MiB scoped default and v7x's
    # 64 MiB physical VMEM with room for weights + state.
    gx_budget_bytes = 16 * 1024 * 1024
    max_chunk = max(1, gx_budget_bytes // (2 * b_blk * 4 * H * 4))
    t_chunk = int(min(t_chunk, max_chunk, T))
    num_t_blocks = pl.cdiv(T, t_chunk)
    Tp = num_t_blocks * t_chunk

    # Input projection hoisted to XLA: one full-batch bf16 MXU matmul
    # (f32 accumulate), emitted time-major -> kernel streams it and never
    # holds x or W_ih.
    bias = (b_ih + b_hh).astype(jnp.float32)
    gates_x = jnp.einsum(
        "bti,gi->tbg", x.astype(mxu_dtype), w_ih.astype(mxu_dtype),
        preferred_element_type=jnp.float32) + bias           # (T, B, 4H) f32
    gates_x = jnp.pad(gates_x, ((0, Tp - T), (0, Bp - B), (0, 0)))

    # Recurrent weight (pre-transpose once per call; store pre-transposed in
    # a real deployment).  bf16 feeds the MXU at full rate; accum stays f32.
    whh_t = jnp.transpose(w_hh).astype(mxu_dtype)            # (H, 4H)

    kernel = _make_lstm_kernel(T, t_chunk, H, mxu_dtype,
                               mask_needed=(Tp != T))

    # Explicit scoped-VMEM limit sized from the actual resident set
    # (defaults are only 16/32/32 MiB on v5e/v6e/v7x).
    resident = (2 * t_chunk * b_blk * 4 * H * 4              # gates_x, 2 bufs
                + H * 4 * H * jnp.dtype(mxu_dtype).itemsize  # W_hh^T
                + 3 * b_blk * H * 4)                         # h, c, out
    vmem_limit = int(min(48 * 1024 * 1024,
                         max(4 * 1024 * 1024, 2 * resident)))

    h_pad = pl.pallas_call(
        kernel,
        out_shape=jax.ShapeDtypeStruct((Bp, H), out_dtype),
        grid=(num_b_blocks, num_t_blocks),
        in_specs=[
            # Streamed (auto double-buffered) time-major gates_x chunks.
            pl.BlockSpec((t_chunk, b_blk, 4 * H), lambda b, t: (t, b, 0)),
            # Recurrent weight: constant block index -> fetched once.
            pl.BlockSpec((H, 4 * H), lambda b, t: (0, 0)),
        ],
        out_specs=pl.BlockSpec((b_blk, H), lambda b, t: (b, 0)),
        scratch_shapes=[
            pltpu.VMEM((b_blk, H), jnp.float32),   # h state
            pltpu.VMEM((b_blk, H), jnp.float32),   # c state
        ],
        compiler_params=pltpu.CompilerParams(
            dimension_semantics=("parallel", "arbitrary"),
            vmem_limit_bytes=vmem_limit),
    )(gates_x, whh_t)

    return h_pad[:B]


def _ref_lstm_last(x, w_ih, w_hh, b_ih, b_hh):
    """Pure-JAX reference matching torch.nn.LSTM (batch_first, zero init)."""
    B, T, I = x.shape
    H = w_hh.shape[1]

    def step(carry, x_t):
        h, c = carry
        gates = x_t @ w_ih.T + b_ih + h @ w_hh.T + b_hh
        i, f, g, o = jnp.split(gates, 4, axis=-1)
        i = jax.nn.sigmoid(i)
        f = jax.nn.sigmoid(f)
        g = jnp.tanh(g)
        o = jax.nn.sigmoid(o)
        c = f * c + i * g
        h = o * jnp.tanh(c)
        return (h, c), h

    init = (jnp.zeros((B, H), x.dtype), jnp.zeros((B, H), x.dtype))
    (h_n, _), _ = jax.lax.scan(step, init, jnp.transpose(x, (1, 0, 2)))
    return h_n


if __name__ == "__main__":
    # Small shapes consistent with the module: batch=2, seq=8, input=16, hidden=32.
    B, T, INPUT, HIDDEN = 2, 8, 16, 32

    key = jax.random.PRNGKey(0)
    kx, k1, k2, k3, k4 = jax.random.split(key, 5)

    x = jax.random.normal(kx, (B, T, INPUT), dtype=jnp.float32)

    # Deterministic parameter init (uniform(-1/sqrt(H), 1/sqrt(H)), like PyTorch).
    bound = 1.0 / float(jnp.sqrt(jnp.float32(HIDDEN)))
    w_ih = jax.random.uniform(k1, (4 * HIDDEN, INPUT), jnp.float32, -bound, bound)
    w_hh = jax.random.uniform(k2, (4 * HIDDEN, HIDDEN), jnp.float32, -bound, bound)
    b_ih = jax.random.uniform(k3, (4 * HIDDEN,), jnp.float32, -bound, bound)
    b_hh = jax.random.uniform(k4, (4 * HIDDEN,), jnp.float32, -bound, bound)

    ref = _ref_lstm_last(x, w_ih, w_hh, b_ih, b_hh)

    # f32-MXU path: tight match vs the f32 reference.
    f32_fn = jax.jit(functools.partial(lstm_encoder_last, mxu_dtype=jnp.float32))
    out_f32 = jax.block_until_ready(f32_fn(x, w_ih, w_hh, b_ih, b_hh))
    assert out_f32.shape == (B, HIDDEN)
    assert jnp.allclose(out_f32, ref, atol=1e-4, rtol=1e-4), "f32 path mismatch"

    # Default bf16-MXU path (perf config): f32 accumulation, looser tolerance.
    bf16_fn = jax.jit(lstm_encoder_last)
    out_bf16 = jax.block_until_ready(bf16_fn(x, w_ih, w_hh, b_ih, b_hh))
    assert out_bf16.shape == (B, HIDDEN)
    assert jnp.allclose(out_bf16, ref, atol=5e-2, rtol=5e-2), "bf16 path mismatch"

    print("KERNEL_OK")
</pallas_src>

<mosaic_0001>
module attributes {stable_mosaic.version = 11 : i64} {
  func.func @kernel(%arg0: i32, %arg1: i32, %arg2: memref<8x8x128xf32, #tpu.memory_space<vmem>>, %arg3: memref<32x128xf32, #tpu.memory_space<vmem>>, %arg4: memref<8x32xf32, #tpu.memory_space<vmem>>, %arg5: memref<8x32xf32, #tpu.memory_space<vmem>>, %arg6: memref<8x32xf32, #tpu.memory_space<vmem>>) attributes {dimension_semantics = [#tpu.dimension_semantics<parallel>, #tpu.dimension_semantics<arbitrary>], iteration_bounds = array<i64: 1, 1>, scalar_prefetch = 0 : i64, scratch_operands = 2 : i64, tpu.core_type = #tpu.core_type<tc>, window_params = [{transform_indices = @transform_0, window_bounds = array<i64: 8, 8, 128>}, {pipeline_mode = #tpu.pipeline_mode<synchronous>, transform_indices = @transform_1, window_bounds = array<i64: 32, 128>}, {transform_indices = @transform_2, window_bounds = array<i64: 8, 32>}]} {
    %c0_i32 = arith.constant 0 : i32
    %0 = arith.cmpi eq, %arg1, %c0_i32 : i32
    %1 = arith.extui %0 : i1 to i32
    %c0_i32_0 = arith.constant 0 : i32
    %2 = arith.cmpi ne, %1, %c0_i32_0 : i32
    scf.if %2 {
      %cst_58 = arith.constant 0.000000e+00 : f32
      %192 = vector.broadcast %cst_58 : f32 to vector<8x32xf32>
      %c0_59 = arith.constant 0 : index
      %c0_60 = arith.constant 0 : index
      %193 = vector.load %arg5[%c0_59, %c0_60] : memref<8x32xf32, #tpu.memory_space<vmem>>, vector<8x32xf32>
      tpu.vector_store %arg5[%c0_59, %c0_60], %192 {strides = array<i32>} : memref<8x32xf32, #tpu.memory_space<vmem>>, vector<8x32xf32>,
      %cst_61 = arith.constant 0.000000e+00 : f32
      %194 = vector.broadcast %cst_61 : f32 to vector<8x32xf32>
      %c0_62 = arith.constant 0 : index
      %c0_63 = arith.constant 0 : index
      %195 = vector.load %arg6[%c0_62, %c0_63] : memref<8x32xf32, #tpu.memory_space<vmem>>, vector<8x32xf32>
      tpu.vector_store %arg6[%c0_62, %c0_63], %194 {strides = array<i32>} : memref<8x32xf32, #tpu.memory_space<vmem>>, vector<8x32xf32>,
    } else {
    }
    %3 = tpu.iota {dimensions = array<i32: 1>} : vector<8x128xi32>
    %c64_i32 = arith.constant 64 : i32
    %4 = vector.broadcast %c64_i32 : i32 to vector<8x128xi32>
    %5 = arith.cmpi sge, %3, %4 : vector<8x128xi32>
    %c96_i32 = arith.constant 96 : i32
    %6 = vector.broadcast %c96_i32 : i32 to vector<8x128xi32>
    %7 = arith.cmpi slt, %3, %6 : vector<8x128xi32>
    %8 = arith.andi %5, %7 : vector<8x128xi1>
    %c0 = arith.constant 0 : index
    %c0_1 = arith.constant 0 : index
    %9 = vector.load %arg5[%c0, %c0_1] : memref<8x32xf32, #tpu.memory_space<vmem>>, vector<8x32xf32>
    %c0_2 = arith.constant 0 : index
    %c0_3 = arith.constant 0 : index
    %10 = vector.load %arg6[%c0_2, %c0_3] : memref<8x32xf32, #tpu.memory_space<vmem>>, vector<8x32xf32>
    %c0_i32_4 = arith.constant 0 : i32
    %11 = arith.index_cast %c0_i32_4 : i32 to index
    %c0_5 = arith.constant 0 : index
    %c0_6 = arith.constant 0 : index
    %12 = vector.load %arg2[%11, %c0_5, %c0_6] : memref<8x8x128xf32, #tpu.memory_space<vmem>>, vector<1x8x128xf32>
    %13 = vector.shape_cast %12 : vector<1x8x128xf32> to vector<8x128xf32>
    %c0_7 = arith.constant 0 : index
    %c0_8 = arith.constant 0 : index
    %14 = vector.load %arg3[%c0_7, %c0_8] : memref<32x128xf32, #tpu.memory_space<vmem>>, vector<32x128xf32>
    %cst = arith.constant dense<0.000000e+00> : vector<8x128xf32>
    %15 = tpu.matmul %9, %14, %cst {dimension_numbers = #tpu.dot_dimension_numbers<[1], [0], [0], [1], [0, 0, 1, 1], [], []>} : vector<8x32xf32>, vector<32x128xf32>, vector<8x128xf32> -> vector<8x128xf32>
    %16 = arith.addf %13, %15 : vector<8x128xf32>
    %17 = math.tanh %16 : vector<8x128xf32>
    %18 = arith.negf %16 : vector<8x128xf32>
    %19 = math.exp %18 : vector<8x128xf32>
    %cst_9 = arith.constant 1.000000e+00 : f32
    %20 = vector.broadcast %cst_9 : f32 to vector<8x128xf32>
    %21 = arith.addf %20, %19 : vector<8x128xf32>
    %22 = arith.divf %20, %21 : vector<8x128xf32>
    %23 = arith.select %8, %17, %22 : vector<8x128xi1>, vector<8x128xf32>
    %24 = vector.extract_strided_slice %23 {offsets = [0, 0], sizes = [8, 32], strides = [1, 1]} : vector<8x128xf32> to vector<8x32xf32>
    %25 = vector.extract_strided_slice %23 {offsets = [0, 32], sizes = [8, 32], strides = [1, 1]} : vector<8x128xf32> to vector<8x32xf32>
    %26 = vector.extract_strided_slice %23 {offsets = [0, 64], sizes = [8, 32], strides = [1, 1]} : vector<8x128xf32> to vector<8x32xf32>
    %27 = vector.extract_strided_slice %23 {offsets = [0, 96], sizes = [8, 32], strides = [1, 1]} : vector<8x128xf32> to vector<8x32xf32>
    %28 = arith.mulf %25, %10 : vector<8x32xf32>
    %29 = arith.mulf %24, %26 : vector<8x32xf32>
    %30 = arith.addf %28, %29 : vector<8x32xf32>
    %31 = math.tanh %30 : vector<8x32xf32>
    %32 = arith.mulf %27, %31 : vector<8x32xf32>
    %c1_i32 = arith.constant 1 : i32
    %33 = arith.index_cast %c1_i32 : i32 to index
    %c0_10 = arith.constant 0 : index
    %c0_11 = arith.constant 0 : index
    %34 = vector.load %arg2[%33, %c0_10, %c0_11] : memref<8x8x128xf32, #tpu.memory_space<vmem>>, vector<1x8x128xf32>
    %35 = vector.shape_cast %34 : vector<1x8x128xf32> to vector<8x128xf32>
    %c0_12 = arith.constant 0 : index
    %c0_13 = arith.constant 0 : index
    %36 = vector.load %arg3[%c0_12, %c0_13] : memref<32x128xf32, #tpu.memory_space<vmem>>, vector<32x128xf32>
    %cst_14 = arith.constant dense<0.000000e+00> : vector<8x128xf32>
    %37 = tpu.matmul %32, %36, %cst_14 {dimension_numbers = #tpu.dot_dimension_numbers<[1], [0], [0], [1], [0, 0, 1, 1], [], []>} : vector<8x32xf32>, vector<32x128xf32>, vector<8x128xf32> -> vector<8x128xf32>
    %38 = arith.addf %35, %37 : vector<8x128xf32>
    %39 = math.tanh %38 : vector<8x128xf32>
    %40 = arith.negf %38 : vector<8x128xf32>
    %41 = math.exp %40 : vector<8x128xf32>
    %cst_15 = arith.constant 1.000000e+00 : f32
    %42 = vector.broadcast %cst_15 : f32 to vector<8x128xf32>
    %43 = arith.addf %42, %41 : vector<8x128xf32>
    %44 = arith.divf %42, %43 : vector<8x128xf32>
    %45 = arith.select %8, %39, %44 : vector<8x128xi1>, vector<8x128xf32>
    %46 = vector.extract_strided_slice %45 {offsets = [0, 0], sizes = [8, 32], strides = [1, 1]} : vector<8x128xf32> to vector<8x32xf32>
    %47 = vector.extract_strided_slice %45 {offsets = [0, 32], sizes = [8, 32], strides = [1, 1]} : vector<8x128xf32> to vector<8x32xf32>
    %48 = vector.extract_strided_slice %45 {offsets = [0, 64], sizes = [8, 32], strides = [1, 1]} : vector<8x128xf32> to vector<8x32xf32>
    %49 = vector.extract_strided_slice %45 {offsets = [0, 96], sizes = [8, 32], strides = [1, 1]} : vector<8x128xf32> to vector<8x32xf32>
    %50 = arith.mulf %47, %30 : vector<8x32xf32>
    %51 = arith.mulf %46, %48 : vector<8x32xf32>
    %52 = arith.addf %50, %51 : vector<8x32xf32>
    %53 = math.tanh %52 : vector<8x32xf32>
    %54 = arith.mulf %49, %53 : vector<8x32xf32>
    %c2_i32 = arith.constant 2 : i32
    %55 = arith.index_cast %c2_i32 : i32 to index
    %c0_16 = arith.constant 0 : index
    %c0_17 = arith.constant 0 : index
    %56 = vector.load %arg2[%55, %c0_16, %c0_17] : memref<8x8x128xf32, #tpu.memory_space<vmem>>, vector<1x8x128xf32>
    %57 = vector.shape_cast %56 : vector<1x8x128xf32> to vector<8x128xf32>
    %c0_18 = arith.constant 0 : index
    %c0_19 = arith.constant 0 : index
    %58 = vector.load %arg3[%c0_18, %c0_19] : memref<32x128xf32, #tpu.memory_space<vmem>>, vector<32x128xf32>
    %cst_20 = arith.constant dense<0.000000e+00> : vector<8x128xf32>
    %59 = tpu.matmul %54, %58, %cst_20 {dimension_numbers = #tpu.dot_dimension_numbers<[1], [0], [0], [1], [0, 0, 1, 1], [], []>} : vector<8x32xf32>, vector<32x128xf32>, vector<8x128xf32> -> vector<8x128xf32>
    %60 = arith.addf %57, %59 : vector<8x128xf32>
    %61 = math.tanh %60 : vector<8x128xf32>
    %62 = arith.negf %60 : vector<8x128xf32>
    %63 = math.exp %62 : vector<8x128xf32>
    %cst_21 = arith.constant 1.000000e+00 : f32
    %64 = vector.broadcast %cst_21 : f32 to vector<8x128xf32>
    %65 = arith.addf %64, %63 : vector<8x128xf32>
    %66 = arith.divf %64, %65 : vector<8x128xf32>
    %67 = arith.select %8, %61, %66 : vector<8x128xi1>, vector<8x128xf32>
    %68 = vector.extract_strided_slice %67 {offsets = [0, 0], sizes = [8, 32], strides = [1, 1]} : vector<8x128xf32> to vector<8x32xf32>
    %69 = vector.extract_strided_slice %67 {offsets = [0, 32], sizes = [8, 32], strides = [1, 1]} : vector<8x128xf32> to vector<8x32xf32>
    %70 = vector.extract_strided_slice %67 {offsets = [0, 64], sizes = [8, 32], strides = [1, 1]} : vector<8x128xf32> to vector<8x32xf32>
    %71 = vector.extract_strided_slice %67 {offsets = [0, 96], sizes = [8, 32], strides = [1, 1]} : vector<8x128xf32> to vector<8x32xf32>
    %72 = arith.mulf %69, %52 : vector<8x32xf32>
    %73 = arith.mulf %68, %70 : vector<8x32xf32>
    %74 = arith.addf %72, %73 : vector<8x32xf32>
    %75 = math.tanh %74 : vector<8x32xf32>
    %76 = arith.mulf %71, %75 : vector<8x32xf32>
    %c3_i32 = arith.constant 3 : i32
    %77 = arith.index_cast %c3_i32 : i32 to index
    %c0_22 = arith.constant 0 : index
    %c0_23 = arith.constant 0 : index
    %78 = vector.load %arg2[%77, %c0_22, %c0_23] : memref<8x8x128xf32, #tpu.memory_space<vmem>>, vector<1x8x128xf32>
    %79 = vector.shape_cast %78 : vector<1x8x128xf32> to vector<8x128xf32>
    %c0_24 = arith.constant 0 : index
    %c0_25 = arith.constant 0 : index
    %80 = vector.load %arg3[%c0_24, %c0_25] : memref<32x128xf32, #tpu.memory_space<vmem>>, vector<32x128xf32>
    %cst_26 = arith.constant dense<0.000000e+00> : vector<8x128xf32>
    %81 = tpu.matmul %76, %80, %cst_26 {dimension_numbers = #tpu.dot_dimension_numbers<[1], [0], [0], [1], [0, 0, 1, 1], [], []>} : vector<8x32xf32>, vector<32x128xf32>, vector<8x128xf32> -> vector<8x128xf32>
    %82 = arith.addf %79, %81 : vector<8x128xf32>
    %83 = math.tanh %82 : vector<8x128xf32>
    %84 = arith.negf %82 : vector<8x128xf32>
    %85 = math.exp %84 : vector<8x128xf32>
    %cst_27 = arith.constant 1.000000e+00 : f32
    %86 = vector.broadcast %cst_27 : f32 to vector<8x128xf32>
    %87 = arith.addf %86, %85 : vector<8x128xf32>
    %88 = arith.divf %86, %87 : vector<8x128xf32>
    %89 = arith.select %8, %83, %88 : vector<8x128xi1>, vector<8x128xf32>
    %90 = vector.extract_strided_slice %89 {offsets = [0, 0], sizes = [8, 32], strides = [1, 1]} : vector<8x128xf32> to vector<8x32xf32>
    %91 = vector.extract_strided_slice %89 {offsets = [0, 32], sizes = [8, 32], strides = [1, 1]} : vector<8x128xf32> to vector<8x32xf32>
    %92 = vector.extract_strided_slice %89 {offsets = [0, 64], sizes = [8, 32], strides = [1, 1]} : vector<8x128xf32> to vector<8x32xf32>
    %93 = vector.extract_strided_slice %89 {offsets = [0, 96], sizes = [8, 32], strides = [1, 1]} : vector<8x128xf32> to vector<8x32xf32>
    %94 = arith.mulf %91, %74 : vector<8x32xf32>
    %95 = arith.mulf %90, %92 : vector<8x32xf32>
    %96 = arith.addf %94, %95 : vector<8x32xf32>
    %97 = math.tanh %96 : vector<8x32xf32>
    %98 = arith.mulf %93, %97 : vector<8x32xf32>
    %c4_i32 = arith.constant 4 : i32
    %99 = arith.index_cast %c4_i32 : i32 to index
    %c0_28 = arith.constant 0 : index
    %c0_29 = arith.constant 0 : index
    %100 = vector.load %arg2[%99, %c0_28, %c0_29] : memref<8x8x128xf32, #tpu.memory_space<vmem>>, vector<1x8x128xf32>
    %101 = vector.shape_cast %100 : vector<1x8x128xf32> to vector<8x128xf32>
    %c0_30 = arith.constant 0 : index
    %c0_31 = arith.constant 0 : index
    %102 = vector.load %arg3[%c0_30, %c0_31] : memref<32x128xf32, #tpu.memory_space<vmem>>, vector<32x128xf32>
    %cst_32 = arith.constant dense<0.000000e+00> : vector<8x128xf32>
    %103 = tpu.matmul %98, %102, %cst_32 {dimension_numbers = #tpu.dot_dimension_numbers<[1], [0], [0], [1], [0, 0, 1, 1], [], []>} : vector<8x32xf32>, vector<32x128xf32>, vector<8x128xf32> -> vector<8x128xf32>
    %104 = arith.addf %101, %103 : vector<8x128xf32>
    %105 = math.tanh %104 : vector<8x128xf32>
    %106 = arith.negf %104 : vector<8x128xf32>
    %107 = math.exp %106 : vector<8x128xf32>
    %cst_33 = arith.constant 1.000000e+00 : f32
    %108 = vector.broadcast %cst_33 : f32 to vector<8x128xf32>
    %109 = arith.addf %108, %107 : vector<8x128xf32>
    %110 = arith.divf %108, %109 : vector<8x128xf32>
    %111 = arith.select %8, %105, %110 : vector<8x128xi1>, vector<8x128xf32>
    %112 = vector.extract_strided_slice %111 {offsets = [0, 0], sizes = [8, 32], strides = [1, 1]} : vector<8x128xf32> to vector<8x32xf32>
    %113 = vector.extract_strided_slice %111 {offsets = [0, 32], sizes = [8, 32], strides = [1, 1]} : vector<8x128xf32> to vector<8x32xf32>
    %114 = vector.extract_strided_slice %111 {offsets = [0, 64], sizes = [8, 32], strides = [1, 1]} : vector<8x128xf32> to vector<8x32xf32>
    %115 = vector.extract_strided_slice %111 {offsets = [0, 96], sizes = [8, 32], strides = [1, 1]} : vector<8x128xf32> to vector<8x32xf32>
    %116 = arith.mulf %113, %96 : vector<8x32xf32>
    %117 = arith.mulf %112, %114 : vector<8x32xf32>
    %118 = arith.addf %116, %117 : vector<8x32xf32>
    %119 = math.tanh %118 : vector<8x32xf32>
    %120 = arith.mulf %115, %119 : vector<8x32xf32>
    %c5_i32 = arith.constant 5 : i32
    %121 = arith.index_cast %c5_i32 : i32 to index
    %c0_34 = arith.constant 0 : index
    %c0_35 = arith.constant 0 : index
    %122 = vector.load %arg2[%121, %c0_34, %c0_35] : memref<8x8x128xf32, #tpu.memory_space<vmem>>, vector<1x8x128xf32>
    %123 = vector.shape_cast %122 : vector<1x8x128xf32> to vector<8x128xf32>
    %c0_36 = arith.constant 0 : index
    %c0_37 = arith.constant 0 : index
    %124 = vector.load %arg3[%c0_36, %c0_37] : memref<32x128xf32, #tpu.memory_space<vmem>>, vector<32x128xf32>
    %cst_38 = arith.constant dense<0.000000e+00> : vector<8x128xf32>
    %125 = tpu.matmul %120, %124, %cst_38 {dimension_numbers = #tpu.dot_dimension_numbers<[1], [0], [0], [1], [0, 0, 1, 1], [], []>} : vector<8x32xf32>, vector<32x128xf32>, vector<8x128xf32> -> vector<8x128xf32>
    %126 = arith.addf %123, %125 : vector<8x128xf32>
    %127 = math.tanh %126 : vector<8x128xf32>
    %128 = arith.negf %126 : vector<8x128xf32>
    %129 = math.exp %128 : vector<8x128xf32>
    %cst_39 = arith.constant 1.000000e+00 : f32
    %130 = vector.broadcast %cst_39 : f32 to vector<8x128xf32>
    %131 = arith.addf %130, %129 : vector<8x128xf32>
    %132 = arith.divf %130, %131 : vector<8x128xf32>
    %133 = arith.select %8, %127, %132 : vector<8x128xi1>, vector<8x128xf32>
    %134 = vector.extract_strided_slice %133 {offsets = [0, 0], sizes = [8, 32], strides = [1, 1]} : vector<8x128xf32> to vector<8x32xf32>
    %135 = vector.extract_strided_slice %133 {offsets = [0, 32], sizes = [8, 32], strides = [1, 1]} : vector<8x128xf32> to vector<8x32xf32>
    %136 = vector.extract_strided_slice %133 {offsets = [0, 64], sizes = [8, 32], strides = [1, 1]} : vector<8x128xf32> to vector<8x32xf32>
    %137 = vector.extract_strided_slice %133 {offsets = [0, 96], sizes = [8, 32], strides = [1, 1]} : vector<8x128xf32> to vector<8x32xf32>
    %138 = arith.mulf %135, %118 : vector<8x32xf32>
    %139 = arith.mulf %134, %136 : vector<8x32xf32>
    %140 = arith.addf %138, %139 : vector<8x32xf32>
    %141 = math.tanh %140 : vector<8x32xf32>
    %142 = arith.mulf %137, %141 : vector<8x32xf32>
    %c6_i32 = arith.constant 6 : i32
    %143 = arith.index_cast %c6_i32 : i32 to index
    %c0_40 = arith.constant 0 : index
    %c0_41 = arith.constant 0 : index
    %144 = vector.load %arg2[%143, %c0_40, %c0_41] : memref<8x8x128xf32, #tpu.memory_space<vmem>>, vector<1x8x128xf32>
    %145 = vector.shape_cast %144 : vector<1x8x128xf32> to vector<8x128xf32>
    %c0_42 = arith.constant 0 : index
    %c0_43 = arith.constant 0 : index
    %146 = vector.load %arg3[%c0_42, %c0_43] : memref<32x128xf32, #tpu.memory_space<vmem>>, vector<32x128xf32>
    %cst_44 = arith.constant dense<0.000000e+00> : vector<8x128xf32>
    %147 = tpu.matmul %142, %146, %cst_44 {dimension_numbers = #tpu.dot_dimension_numbers<[1], [0], [0], [1], [0, 0, 1, 1], [], []>} : vector<8x32xf32>, vector<32x128xf32>, vector<8x128xf32> -> vector<8x128xf32>
    %148 = arith.addf %145, %147 : vector<8x128xf32>
    %149 = math.tanh %148 : vector<8x128xf32>
    %150 = arith.negf %148 : vector<8x128xf32>
    %151 = math.exp %150 : vector<8x128xf32>
    %cst_45 = arith.constant 1.000000e+00 : f32
    %152 = vector.broadcast %cst_45 : f32 to vector<8x128xf32>
    %153 = arith.addf %152, %151 : vector<8x128xf32>
    %154 = arith.divf %152, %153 : vector<8x128xf32>
    %155 = arith.select %8, %149, %154 : vector<8x128xi1>, vector<8x128xf32>
    %156 = vector.extract_strided_slice %155 {offsets = [0, 0], sizes = [8, 32], strides = [1, 1]} : vector<8x128xf32> to vector<8x32xf32>
    %157 = vector.extract_strided_slice %155 {offsets = [0, 32], sizes = [8, 32], strides = [1, 1]} : vector<8x128xf32> to vector<8x32xf32>
    %158 = vector.extract_strided_slice %155 {offsets = [0, 64], sizes = [8, 32], strides = [1, 1]} : vector<8x128xf32> to vector<8x32xf32>
    %159 = vector.extract_strided_slice %155 {offsets = [0, 96], sizes = [8, 32], strides = [1, 1]} : vector<8x128xf32> to vector<8x32xf32>
    %160 = arith.mulf %157, %140 : vector<8x32xf32>
    %161 = arith.mulf %156, %158 : vector<8x32xf32>
    %162 = arith.addf %160, %161 : vector<8x32xf32>
    %163 = math.tanh %162 : vector<8x32xf32>
    %164 = arith.mulf %159, %163 : vector<8x32xf32>
    %c7_i32 = arith.constant 7 : i32
    %165 = arith.index_cast %c7_i32 : i32 to index
    %c0_46 = arith.constant 0 : index
    %c0_47 = arith.constant 0 : index
    %166 = vector.load %arg2[%165, %c0_46, %c0_47] : memref<8x8x128xf32, #tpu.memory_space<vmem>>, vector<1x8x128xf32>
    %167 = vector.shape_cast %166 : vector<1x8x128xf32> to vector<8x128xf32>
    %c0_48 = arith.constant 0 : index
    %c0_49 = arith.constant 0 : index
    %168 = vector.load %arg3[%c0_48, %c0_49] : memref<32x128xf32, #tpu.memory_space<vmem>>, vector<32x128xf32>
    %cst_50 = arith.constant dense<0.000000e+00> : vector<8x128xf32>
    %169 = tpu.matmul %164, %168, %cst_50 {dimension_numbers = #tpu.dot_dimension_numbers<[1], [0], [0], [1], [0, 0, 1, 1], [], []>} : vector<8x32xf32>, vector<32x128xf32>, vector<8x128xf32> -> vector<8x128xf32>
    %170 = arith.addf %167, %169 : vector<8x128xf32>
    %171 = math.tanh %170 : vector<8x128xf32>
    %172 = arith.negf %170 : vector<8x128xf32>
    %173 = math.exp %172 : vector<8x128xf32>
    %cst_51 = arith.constant 1.000000e+00 : f32
    %174 = vector.broadcast %cst_51 : f32 to vector<8x128xf32>
    %175 = arith.addf %174, %173 : vector<8x128xf32>
    %176 = arith.divf %174, %175 : vector<8x128xf32>
    %177 = arith.select %8, %171, %176 : vector<8x128xi1>, vector<8x128xf32>
    %178 = vector.extract_strided_slice %177 {offsets = [0, 0], sizes = [8, 32], strides = [1, 1]} : vector<8x128xf32> to vector<8x32xf32>
    %179 = vector.extract_strided_slice %177 {offsets = [0, 32], sizes = [8, 32], strides = [1, 1]} : vector<8x128xf32> to vector<8x32xf32>
    %180 = vector.extract_strided_slice %177 {offsets = [0, 64], sizes = [8, 32], strides = [1, 1]} : vector<8x128xf32> to vector<8x32xf32>
    %181 = vector.extract_strided_slice %177 {offsets = [0, 96], sizes = [8, 32], strides = [1, 1]} : vector<8x128xf32> to vector<8x32xf32>
    %182 = arith.mulf %179, %162 : vector<8x32xf32>
    %183 = arith.mulf %178, %180 : vector<8x32xf32>
    %184 = arith.addf %182, %183 : vector<8x32xf32>
    %185 = math.tanh %184 : vector<8x32xf32>
    %186 = arith.mulf %181, %185 : vector<8x32xf32>
    %c8_i32 = arith.constant 8 : i32
    %c0_52 = arith.constant 0 : index
    %c0_53 = arith.constant 0 : index
    %187 = vector.load %arg5[%c0_52, %c0_53] : memref<8x32xf32, #tpu.memory_space<vmem>>, vector<8x32xf32>
    tpu.vector_store %arg5[%c0_52, %c0_53], %186 {strides = array<i32>} : memref<8x32xf32, #tpu.memory_space<vmem>>, vector<8x32xf32>,
    %c0_54 = arith.constant 0 : index
    %c0_55 = arith.constant 0 : index
    %188 = vector.load %arg6[%c0_54, %c0_55] : memref<8x32xf32, #tpu.memory_space<vmem>>, vector<8x32xf32>
    tpu.vector_store %arg6[%c0_54, %c0_55], %184 {strides = array<i32>} : memref<8x32xf32, #tpu.memory_space<vmem>>, vector<8x32xf32>,
    %c0_i32_56 = arith.constant 0 : i32
    %189 = arith.cmpi eq, %arg1, %c0_i32_56 : i32
    %190 = arith.extui %189 : i1 to i32
    %c0_i32_57 = arith.constant 0 : i32
    %191 = arith.cmpi ne, %190, %c0_i32_57 : i32
    scf.if %191 {
      %c0_58 = arith.constant 0 : index
      %c0_59 = arith.constant 0 : index
      %192 = vector.load %arg4[%c0_58, %c0_59] : memref<8x32xf32, #tpu.memory_space<vmem>>, vector<8x32xf32>
      tpu.vector_store %arg4[%c0_58, %c0_59], %186 {strides = array<i32>} : memref<8x32xf32, #tpu.memory_space<vmem>>, vector<8x32xf32>,
    } else {
    }
    return
  }
  func.func @transform_0(%arg0: i32, %arg1: i32) -> (i32, i32, i32) {
    %c0_i32 = arith.constant 0 : i32
    %c0_i32_0 = arith.constant 0 : i32
    return %arg1, %arg0, %c0_i32 : i32, i32, i32
  }
  func.func @transform_1(%arg0: i32, %arg1: i32) -> (i32, i32) {
    %c0_i32 = arith.constant 0 : i32
    %c0_i32_0 = arith.constant 0 : i32
    %c0_i32_1 = arith.constant 0 : i32
    return %c0_i32, %c0_i32_0 : i32, i32
  }
  func.func @transform_2(%arg0: i32, %arg1: i32) -> (i32, i32) {
    %c0_i32 = arith.constant 0 : i32
    %c0_i32_0 = arith.constant 0 : i32
    return %arg0, %c0_i32 : i32, i32
  }
}

</mosaic_0001>

<llo_original>
// kernel: lstm_encoder_last.1
$region0: #{lstm_encoder_last.1}
  #allocation0 [shape = 'u32[]', space=smem, size = 0x4, offset = 0x4, fixed_abs, tag = 'smem constant byte address 0x4 - core index']
  #allocation1 [shape = 'u32[144,128]{1,0:T(1,128)}', space=vmem, size = 0x12000, scoped, tag = 'internal scratch']
  #allocation2 [shape = 'f32[8,32]{1,0:T(8,128)}', space=vmem, size = 0x1000, scoped, tag = 'scratch operand']
  #allocation3 [shape = 'f32[8,32]{1,0:T(8,128)}', space=vmem, size = 0x1000, scoped, tag = 'scratch operand']
  %s0 = inlined_call_operand.vmem [shape: f32[8,8,128], index: 0, kind: input, shape index: {}]
  %s1 = inlined_call_operand.vmem [shape: f32[32,128], index: 1, kind: input, shape index: {}]
  %s2 = inlined_call_operand.vmem [shape: f32[8,32], index: 2, kind: output, shape index: {}]
  %s3 = sld [smem:[#allocation0]]
  $region26: #{lstm_encoder_last.1} parent=0
    _
  %s5 = ssub.s32 1, %s3
  %s6 = scalar_select 0, %s5, %s3
  // Predicated region
  $region2: #{lstm_encoder_last.1} parent=0 // pred_check
    _
  $region3: #{lstm_encoder_last.1} parent=0 // pred_check_branch
    %8 = sbr.rel (0) target = $region5
  $region4: #{lstm_encoder_last.1} parent=0 // pred_region
    _
  $region5: #{lstm_encoder_last.1} parent=0 // pred_fallthru
    _
  // Predicated region
  $region6: #{lstm_encoder_last.1} parent=0 // pred_check
    _
  $region7: #{lstm_encoder_last.1} parent=0 // pred_check_branch
    %10 = sbr.rel (0) target = $region9
  $region8: #{lstm_encoder_last.1} parent=0 // pred_region
    _
  $region9: #{lstm_encoder_last.1} parent=0 // pred_fallthru
    _
  %p11 = scmp.eq.s32.totalorder 0, 0
  // Predicated region
  $region10: #{lstm_encoder_last.1} parent=0 // pred_check
    %p12 = pneg %p11
  $region11: #{lstm_encoder_last.1} parent=0 // pred_check_branch
    %14 = sbr.rel (%p12) target = $region13
  $region12: #{lstm_encoder_last.1} parent=0 // pred_region
    %vm15 = vcmask 261120
    %16 = vst.msk [vmem:[#allocation2] sm:$0xff] %vm15, 0.0
    %17 = vst.msk [vmem:[#allocation3] sm:$0xff] %vm15, 0.0
  $region13: #{lstm_encoder_last.1} parent=0 // pred_fallthru
    _
  %v18 = vlaneseq
  %v19 = vand.u32 %v18, 127
  %vm20 = vcmp.ge.s32.totalorder %v19, 64
  %vm21 = vcmp.lt.s32.totalorder %v19, 96
  %vm22 = vmand %vm20, %vm21
  %v23 = vld [vmem:[#allocation2] sm:$0xff]
  %v24 = vld [vmem:[#allocation3] sm:$0xff]
  %v25 = vld [vmem:[%s0] sm:$0xff]
  %v26 = vld [vmem:[%s1] sm:$0xff]
  %v27 = vld [vmem:[%s1 + $0x8] sm:$0xff]
  %v28 = vld [vmem:[%s1 + $0x10] sm:$0xff]
  %v29 = vld [vmem:[%s1 + $0x18] sm:$0xff]
  %vm30 = vcmask 261120
  %v32 = vsel %vm30, %v23, 0
  %34 = vmatprep.subr.mxu0 0.0
  %35 = vmatpush1.msra.mxu0 %v26
  %36 = vmatprep.subr.mxu0 0.0
  %37 = vmatpush1.msra.mxu0 %v27
  %38 = vmatprep.subr.mxu0 0.0
  %39 = vmatpush1.msra.mxu0 %v28
  %40 = vmatprep.subr.mxu0 0.0
  %41 = vmatpush1.msra.mxu0 %v29
  %42 = vmatprep.subr.mxu0 0.0
  %43 = vmatpush1.msra.mxu0 0.0
  %44 = vmatprep.subr.mxu0 0.0
  %45 = vmatpush1.msra.mxu0 0.0
  %46 = vmatprep.subr.mxu0 0.0
  %47 = vmatpush1.msra.mxu0 0.0
  %48 = vmatprep.subr.mxu0 0.0
  %49 = vmatpush1.msra.mxu0 0.0
  %50 = vmatprep.subr.mxu0 0.0
  %51 = vmatpush1.msra.mxu0 0.0
  %52 = vmatprep.subr.mxu0 0.0
  %53 = vmatpush1.msra.mxu0 0.0
  %54 = vmatprep.subr.mxu0 0.0
  %55 = vmatpush1.msra.mxu0 0.0
  %56 = vmatprep.subr.mxu0 0.0
  %57 = vmatpush1.msra.mxu0 0.0
  %58 = vmatprep.subr.mxu0 0.0
  %59 = vmatpush1.msra.mxu0 0.0
  %60 = vmatprep.subr.mxu0 0.0
  %61 = vmatpush1.msra.mxu0 0.0
  %62 = vmatprep.subr.mxu0 0.0
  %63 = vmatpush1.msra.mxu0 0.0
  %64 = vmatprep.subr.mxu0 0.0
  %65 = vmatpush1.msra.mxu0 0.0
  %66 = vmatprep.subr.mxu0 0.0
  %67 = vmatpush1.msra.mxu0 0.0
  %68 = vmatprep.subr.mxu0 0.0
  %69 = vmatpush1.msra.mxu0 0.0
  %70 = vmatprep.subr.mxu0 0.0
  %71 = vmatpush1.msra.mxu0 0.0
  %72 = vmatprep.subr.mxu0 0.0
  %73 = vmatpush1.msra.mxu0 0.0
  %74 = vmatprep.subr.mxu0 0.0
  %75 = vmatpush1.msra.mxu0 0.0
  %76 = vmatprep.subr.mxu0 0.0
  %77 = vmatpush1.msra.mxu0 0.0
  %78 = vmatprep.subr.mxu0 0.0
  %79 = vmatpush1.msra.mxu0 0.0
  %80 = vmatprep.subr.mxu0 0.0
  %81 = vmatpush1.msra.mxu0 0.0
  %82 = vmatprep.subr.mxu0 0.0
  %83 = vmatpush1.msra.mxu0 0.0
  %84 = vmatprep.subr.mxu0 0.0
  %85 = vmatpush1.msra.mxu0 0.0
  %86 = vmatprep.subr.mxu0 0.0
  %87 = vmatpush1.msra.mxu0 0.0
  %88 = vmatprep.subr.mxu0 0.0
  %89 = vmatpush1.msra.mxu0 0.0
  %90 = vmatprep.subr.mxu0 0.0
  %91 = vmatpush1.msra.mxu0 0.0
  %92 = vmatprep.subr.mxu0 0.0
  %93 = vmatpush1.msra.mxu0 0.0
  %94 = vmatprep.subr.mxu0 0.0
  %95 = vmatpush1.msra.mxu0 0.0
  %96 = vmatprep.subr.mxu0 0.0
  %97 = vmatpush1.msra.mxu0 0.0
  %98 = vmatprep.mubr.f32.mxu0 0.0
  %99 = vmatmul.mubr.f32.gmra.mrb[0].mxu0 %v32
  %v100 = vpop.f32.mrb[0].mxu0
  %v101 = vadd.f32 0.0, %v100
  %v102 = vpop.f32.mrb[0].mxu0
  %103 = vdwg.mxu0
  %v104 = vadd.f32 %v25, %v101
  %v105 = vtanh.pop %v104
  %v106 = vxor.u32 %v104, 2147483648
  %v107 = vmul.f32 %v106, 1.442695
  %v108 = vpow.pop %v107
  %v109 = vadd.f32 %v108, 1.0
  %v110 = vrcp.pop %v109
  %v111 = vmul.f32 1.0, %v110
  %v112 = vsel %vm22, %v105, %v111
  %114 = vrot.lane.b32.xlu0 %v24, 32
  %v115 = vpop.permute.xlu0 %114
  %v117 = vmul.f32 %v112, %v115
  %119 = vrot.lane.b32.xlu0 %v112, 64
  %v120 = vpop.permute.xlu0 %119
  %v122 = vmul.f32 %v112, %v120
  %124 = vrot.lane.b32.xlu0 %v122, 32
  %v125 = vpop.permute.xlu0 %124
  %v127 = vadd.f32 %v117, %v125
  %v128 = vtanh.pop %v127
  %130 = vrot.lane.b32.xlu0 %v128, 64
  %v131 = vpop.permute.xlu0 %130
  %v133 = vmul.f32 %v112, %v131
  %s134 = scalar_lea.vmem %s0, 8
  %v135 = vld [vmem:[%s134] sm:$0xff]
  %137 = vrot.lane.b32.xlu0 %v133, 32
  %v138 = vpop.permute.xlu0 %137
  %v139 = vsel %vm30, %v138, 0
  %141 = vmatprep.subr.mxu0 0.0
  %142 = vmatpush1.msra.mxu0 %v26
  %143 = vmatprep.subr.mxu0 0.0
  %144 = vmatpush1.msra.mxu0 %v27
  %145 = vmatprep.subr.mxu0 0.0
  %146 = vmatpush1.msra.mxu0 %v28
  %147 = vmatprep.subr.mxu0 0.0
  %148 = vmatpush1.msra.mxu0 %v29
  %149 = vmatprep.subr.mxu0 0.0
  %150 = vmatpush1.msra.mxu0 0.0
  %151 = vmatprep.subr.mxu0 0.0
  %152 = vmatpush1.msra.mxu0 0.0
  %153 = vmatprep.subr.mxu0 0.0
  %154 = vmatpush1.msra.mxu0 0.0
  %155 = vmatprep.subr.mxu0 0.0
  %156 = vmatpush1.msra.mxu0 0.0
  %157 = vmatprep.subr.mxu0 0.0
  %158 = vmatpush1.msra.mxu0 0.0
  %159 = vmatprep.subr.mxu0 0.0
  %160 = vmatpush1.msra.mxu0 0.0
  %161 = vmatprep.subr.mxu0 0.0
  %162 = vmatpush1.msra.mxu0 0.0
  %163 = vmatprep.subr.mxu0 0.0
  %164 = vmatpush1.msra.mxu0 0.0
  %165 = vmatprep.subr.mxu0 0.0
  %166 = vmatpush1.msra.mxu0 0.0
  %167 = vmatprep.subr.mxu0 0.0
  %168 = vmatpush1.msra.mxu0 0.0
  %169 = vmatprep.subr.mxu0 0.0
  %170 = vmatpush1.msra.mxu0 0.0
  %171 = vmatprep.subr.mxu0 0.0
  %172 = vmatpush1.msra.mxu0 0.0
  %173 = vmatprep.subr.mxu0 0.0
  %174 = vmatpush1.msra.mxu0 0.0
  %175 = vmatprep.subr.mxu0 0.0
  %176 = vmatpush1.msra.mxu0 0.0
  %177 = vmatprep.subr.mxu0 0.0
  %178 = vmatpush1.msra.mxu0 0.0
  %179 = vmatprep.subr.mxu0 0.0
  %180 = vmatpush1.msra.mxu0 0.0
  %181 = vmatprep.subr.mxu0 0.0
  %182 = vmatpush1.msra.mxu0 0.0
  %183 = vmatprep.subr.mxu0 0.0
  %184 = vmatpush1.msra.mxu0 0.0
  %185 = vmatprep.subr.mxu0 0.0
  %186 = vmatpush1.msra.mxu0 0.0
  %187 = vmatprep.subr.mxu0 0.0
  %188 = vmatpush1.msra.mxu0 0.0
  %189 = vmatprep.subr.mxu0 0.0
  %190 = vmatpush1.msra.mxu0 0.0
  %191 = vmatprep.subr.mxu0 0.0
  %192 = vmatpush1.msra.mxu0 0.0
  %193 = vmatprep.subr.mxu0 0.0
  %194 = vmatpush1.msra.mxu0 0.0
  %195 = vmatprep.subr.mxu0 0.0
  %196 = vmatpush1.msra.mxu0 0.0
  %197 = vmatprep.subr.mxu0 0.0
  %198 = vmatpush1.msra.mxu0 0.0
  %199 = vmatprep.subr.mxu0 0.0
  %200 = vmatpush1.msra.mxu0 0.0
  %201 = vmatprep.subr.mxu0 0.0
  %202 = vmatpush1.msra.mxu0 0.0
  %203 = vmatprep.subr.mxu0 0.0
  %204 = vmatpush1.msra.mxu0 0.0
  %205 = vmatprep.mubr.f32.mxu0 0.0
  %206 = vmatmul.mubr.f32.gmra.mrb[0].mxu0 %v139
  %v207 = vpop.f32.mrb[0].mxu0
  %v208 = vadd.f32 0.0, %v207
  %v209 = vpop.f32.mrb[0].mxu0
  %210 = vdwg.mxu0
  %v211 = vadd.f32 %v135, %v208
  %v212 = vtanh.pop %v211
  %v213 = vxor.u32 %v211, 2147483648
  %v214 = vmul.f32 %v213, 1.442695
  %v215 = vpow.pop %v214
  %v216 = vadd.f32 %v215, 1.0
  %v217 = vrcp.pop %v216
  %v218 = vmul.f32 1.0, %v217
  %v219 = vsel %vm22, %v212, %v218
  %v220 = vmul.f32 %v219, %v127
  %222 = vrot.lane.b32.xlu0 %v219, 64
  %v223 = vpop.permute.xlu0 %222
  %v225 = vmul.f32 %v219, %v223
  %227 = vrot.lane.b32.xlu0 %v225, 32
  %v228 = vpop.permute.xlu0 %227
  %v230 = vadd.f32 %v220, %v228
  %v231 = vtanh.pop %v230
  %233 = vrot.lane.b32.xlu0 %v231, 64
  %v234 = vpop.permute.xlu0 %233
  %v236 = vmul.f32 %v219, %v234
  %s237 = scalar_lea.vmem %s0, 16
  %v238 = vld [vmem:[%s237] sm:$0xff]
  %240 = vrot.lane.b32.xlu0 %v236, 32
  %v241 = vpop.permute.xlu0 %240
  %v242 = vsel %vm30, %v241, 0
  %244 = vmatprep.subr.mxu0 0.0
  %245 = vmatpush1.msra.mxu0 %v26
  %246 = vmatprep.subr.mxu0 0.0
  %247 = vmatpush1.msra.mxu0 %v27
  %248 = vmatprep.subr.mxu0 0.0
  %249 = vmatpush1.msra.mxu0 %v28
  %250 = vmatprep.subr.mxu0 0.0
  %251 = vmatpush1.msra.mxu0 %v29
  %252 = vmatprep.subr.mxu0 0.0
  %253 = vmatpush1.msra.mxu0 0.0
  %254 = vmatprep.subr.mxu0 0.0
  %255 = vmatpush1.msra.mxu0 0.0
  %256 = vmatprep.subr.mxu0 0.0
  %257 = vmatpush1.msra.mxu0 0.0
  %258 = vmatprep.subr.mxu0 0.0
  %259 = vmatpush1.msra.mxu0 0.0
  %260 = vmatprep.subr.mxu0 0.0
  %261 = vmatpush1.msra.mxu0 0.0
  %262 = vmatprep.subr.mxu0 0.0
  %263 = vmatpush1.msra.mxu0 0.0
  %264 = vmatprep.subr.mxu0 0.0
  %265 = vmatpush1.msra.mxu0 0.0
  %266 = vmatprep.subr.mxu0 0.0
  %267 = vmatpush1.msra.mxu0 0.0
  %268 = vmatprep.subr.mxu0 0.0
  %269 = vmatpush1.msra.mxu0 0.0
  %270 = vmatprep.subr.mxu0 0.0
  %271 = vmatpush1.msra.mxu0 0.0
  %272 = vmatprep.subr.mxu0 0.0
  %273 = vmatpush1.msra.mxu0 0.0
  %274 = vmatprep.subr.mxu0 0.0
  %275 = vmatpush1.msra.mxu0 0.0
  %276 = vmatprep.subr.mxu0 0.0
  %277 = vmatpush1.msra.mxu0 0.0
  %278 = vmatprep.subr.mxu0 0.0
  %279 = vmatpush1.msra.mxu0 0.0
  %280 = vmatprep.subr.mxu0 0.0
  %281 = vmatpush1.msra.mxu0 0.0
  %282 = vmatprep.subr.mxu0 0.0
  %283 = vmatpush1.msra.mxu0 0.0
  %284 = vmatprep.subr.mxu0 0.0
  %285 = vmatpush1.msra.mxu0 0.0
  %286 = vmatprep.subr.mxu0 0.0
  %287 = vmatpush1.msra.mxu0 0.0
  %288 = vmatprep.subr.mxu0 0.0
  %289 = vmatpush1.msra.mxu0 0.0
  %290 = vmatprep.subr.mxu0 0.0
  %291 = vmatpush1.msra.mxu0 0.0
  %292 = vmatprep.subr.mxu0 0.0
  %293 = vmatpush1.msra.mxu0 0.0
  %294 = vmatprep.subr.mxu0 0.0
  %295 = vmatpush1.msra.mxu0 0.0
  %296 = vmatprep.subr.mxu0 0.0
  %297 = vmatpush1.msra.mxu0 0.0
  %298 = vmatprep.subr.mxu0 0.0
  %299 = vmatpush1.msra.mxu0 0.0
  %300 = vmatprep.subr.mxu0 0.0
  %301 = vmatpush1.msra.mxu0 0.0
  %302 = vmatprep.subr.mxu0 0.0
  %303 = vmatpush1.msra.mxu0 0.0
  %304 = vmatprep.subr.mxu0 0.0
  %305 = vmatpush1.msra.mxu0 0.0
  %306 = vmatprep.subr.mxu0 0.0
  %307 = vmatpush1.msra.mxu0 0.0
  %308 = vmatprep.mubr.f32.mxu0 0.0
  %309 = vmatmul.mubr.f32.gmra.mrb[0].mxu0 %v242
  %v310 = vpop.f32.mrb[0].mxu0
  %v311 = vadd.f32 0.0, %v310
  %v312 = vpop.f32.mrb[0].mxu0
  %313 = vdwg.mxu0
  %v314 = vadd.f32 %v238, %v311
  %v315 = vtanh.pop %v314
  %v316 = vxor.u32 %v314, 2147483648
  %v317 = vmul.f32 %v316, 1.442695
  %v318 = vpow.pop %v317
  %v319 = vadd.f32 %v318, 1.0
  %v320 = vrcp.pop %v319
  %v321 = vmul.f32 1.0, %v320
  %v322 = vsel %vm22, %v315, %v321
  %v323 = vmul.f32 %v322, %v230
  %325 = vrot.lane.b32.xlu0 %v322, 64
  %v326 = vpop.permute.xlu0 %325
  %v328 = vmul.f32 %v322, %v326
  %330 = vrot.lane.b32.xlu0 %v328, 32
  %v331 = vpop.permute.xlu0 %330
  %v333 = vadd.f32 %v323, %v331
  %v334 = vtanh.pop %v333
  %336 = vrot.lane.b32.xlu0 %v334, 64
  %v337 = vpop.permute.xlu0 %336
  %v339 = vmul.f32 %v322, %v337
  %s340 = scalar_lea.vmem %s0, 24
  %v341 = vld [vmem:[%s340] sm:$0xff]
  %343 = vrot.lane.b32.xlu0 %v339, 32
  %v344 = vpop.permute.xlu0 %343
  %v345 = vsel %vm30, %v344, 0
  %347 = vmatprep.subr.mxu0 0.0
  %348 = vmatpush1.msra.mxu0 %v26
  %349 = vmatprep.subr.mxu0 0.0
  %350 = vmatpush1.msra.mxu0 %v27
  %351 = vmatprep.subr.mxu0 0.0
  %352 = vmatpush1.msra.mxu0 %v28
  %353 = vmatprep.subr.mxu0 0.0
  %354 = vmatpush1.msra.mxu0 %v29
  %355 = vmatprep.subr.mxu0 0.0
  %356 = vmatpush1.msra.mxu0 0.0
  %357 = vmatprep.subr.mxu0 0.0
  %358 = vmatpush1.msra.mxu0 0.0
  %359 = vmatprep.subr.mxu0 0.0
  %360 = vmatpush1.msra.mxu0 0.0
  %361 = vmatprep.subr.mxu0 0.0
  %362 = vmatpush1.msra.mxu0 0.0
  %363 = vmatprep.subr.mxu0 0.0
  %364 = vmatpush1.msra.mxu0 0.0
  %365 = vmatprep.subr.mxu0 0.0
  %366 = vmatpush1.msra.mxu0 0.0
  %367 = vmatprep.subr.mxu0 0.0
  %368 = vmatpush1.msra.mxu0 0.0
  %369 = vmatprep.subr.mxu0 0.0
  %370 = vmatpush1.msra.mxu0 0.0
  %371 = vmatprep.subr.mxu0 0.0
  %372 = vmatpush1.msra.mxu0 0.0
  %373 = vmatprep.subr.mxu0 0.0
  %374 = vmatpush1.msra.mxu0 0.0
  %375 = vmatprep.subr.mxu0 0.0
  %376 = vmatpush1.msra.mxu0 0.0
  %377 = vmatprep.subr.mxu0 0.0
  %378 = vmatpush1.msra.mxu0 0.0
  %379 = vmatprep.subr.mxu0 0.0
  %380 = vmatpush1.msra.mxu0 0.0
  %381 = vmatprep.subr.mxu0 0.0
  %382 = vmatpush1.msra.mxu0 0.0
  %383 = vmatprep.subr.mxu0 0.0
  %384 = vmatpush1.msra.mxu0 0.0
  %385 = vmatprep.subr.mxu0 0.0
  %386 = vmatpush1.msra.mxu0 0.0
  %387 = vmatprep.subr.mxu0 0.0
  %388 = vmatpush1.msra.mxu0 0.0
  %389 = vmatprep.subr.mxu0 0.0
  %390 = vmatpush1.msra.mxu0 0.0
  %391 = vmatprep.subr.mxu0 0.0
  %392 = vmatpush1.msra.mxu0 0.0
  %393 = vmatprep.subr.mxu0 0.0
  %394 = vmatpush1.msra.mxu0 0.0
  %395 = vmatprep.subr.mxu0 0.0
  %396 = vmatpush1.msra.mxu0 0.0
  %397 = vmatprep.subr.mxu0 0.0
  %398 = vmatpush1.msra.mxu0 0.0
  %399 = vmatprep.subr.mxu0 0.0
  %400 = vmatpush1.msra.mxu0 0.0
  %401 = vmatprep.subr.mxu0 0.0
  %402 = vmatpush1.msra.mxu0 0.0
  %403 = vmatprep.subr.mxu0 0.0
  %404 = vmatpush1.msra.mxu0 0.0
  %405 = vmatprep.subr.mxu0 0.0
  %406 = vmatpush1.msra.mxu0 0.0
  %407 = vmatprep.subr.mxu0 0.0
  %408 = vmatpush1.msra.mxu0 0.0
  %409 = vmatprep.subr.mxu0 0.0
  %410 = vmatpush1.msra.mxu0 0.0
  %411 = vmatprep.mubr.f32.mxu0 0.0
  %412 = vmatmul.mubr.f32.gmra.mrb[0].mxu0 %v345
  %v413 = vpop.f32.mrb[0].mxu0
  %v414 = vadd.f32 0.0, %v413
  %v415 = vpop.f32.mrb[0].mxu0
  %416 = vdwg.mxu0
  %v417 = vadd.f32 %v341, %v414
  %v418 = vtanh.pop %v417
  %v419 = vxor.u32 %v417, 2147483648
  %v420 = vmul.f32 %v419, 1.442695
  %v421 = vpow.pop %v420
  %v422 = vadd.f32 %v421, 1.0
  %v423 = vrcp.pop %v422
  %v424 = vmul.f32 1.0, %v423
  %v425 = vsel %vm22, %v418, %v424
  %v426 = vmul.f32 %v425, %v333
  %428 = vrot.lane.b32.xlu0 %v425, 64
  %v429 = vpop.permute.xlu0 %428
  %v431 = vmul.f32 %v425, %v429
  %433 = vrot.lane.b32.xlu0 %v431, 32
  %v434 = vpop.permute.xlu0 %433
  %v436 = vadd.f32 %v426, %v434
  %v437 = vtanh.pop %v436
  %439 = vrot.lane.b32.xlu0 %v437, 64
  %v440 = vpop.permute.xlu0 %439
  %v442 = vmul.f32 %v425, %v440
  %s443 = scalar_lea.vmem %s0, 32
  %v444 = vld [vmem:[%s443] sm:$0xff]
  %446 = vrot.lane.b32.xlu0 %v442, 32
  %v447 = vpop.permute.xlu0 %446
  %v448 = vsel %vm30, %v447, 0
  %450 = vmatprep.subr.mxu0 0.0
  %451 = vmatpush1.msra.mxu0 %v26
  %452 = vmatprep.subr.mxu0 0.0
  %453 = vmatpush1.msra.mxu0 %v27
  %454 = vmatprep.subr.mxu0 0.0
  %455 = vmatpush1.msra.mxu0 %v28
  %456 = vmatprep.subr.mxu0 0.0
  %457 = vmatpush1.msra.mxu0 %v29
  %458 = vmatprep.subr.mxu0 0.0
  %459 = vmatpush1.msra.mxu0 0.0
  %460 = vmatprep.subr.mxu0 0.0
  %461 = vmatpush1.msra.mxu0 0.0
  %462 = vmatprep.subr.mxu0 0.0
  %463 = vmatpush1.msra.mxu0 0.0
  %464 = vmatprep.subr.mxu0 0.0
  %465 = vmatpush1.msra.mxu0 0.0
  %466 = vmatprep.subr.mxu0 0.0
  %467 = vmatpush1.msra.mxu0 0.0
  %468 = vmatprep.subr.mxu0 0.0
  %469 = vmatpush1.msra.mxu0 0.0
  %470 = vmatprep.subr.mxu0 0.0
  %471 = vmatpush1.msra.mxu0 0.0
  %472 = vmatprep.subr.mxu0 0.0
  %473 = vmatpush1.msra.mxu0 0.0
  %474 = vmatprep.subr.mxu0 0.0
  %475 = vmatpush1.msra.mxu0 0.0
  %476 = vmatprep.subr.mxu0 0.0
  %477 = vmatpush1.msra.mxu0 0.0
  %478 = vmatprep.subr.mxu0 0.0
  %479 = vmatpush1.msra.mxu0 0.0
  %480 = vmatprep.subr.mxu0 0.0
  %481 = vmatpush1.msra.mxu0 0.0
  %482 = vmatprep.subr.mxu0 0.0
  %483 = vmatpush1.msra.mxu0 0.0
  %484 = vmatprep.subr.mxu0 0.0
  %485 = vmatpush1.msra.mxu0 0.0
  %486 = vmatprep.subr.mxu0 0.0
  %487 = vmatpush1.msra.mxu0 0.0
  %488 = vmatprep.subr.mxu0 0.0
  %489 = vmatpush1.msra.mxu0 0.0
  %490 = vmatprep.subr.mxu0 0.0
  %491 = vmatpush1.msra.mxu0 0.0
  %492 = vmatprep.subr.mxu0 0.0
  %493 = vmatpush1.msra.mxu0 0.0
  %494 = vmatprep.subr.mxu0 0.0
  %495 = vmatpush1.msra.mxu0 0.0
  %496 = vmatprep.subr.mxu0 0.0
  %497 = vmatpush1.msra.mxu0 0.0
  %498 = vmatprep.subr.mxu0 0.0
  %499 = vmatpush1.msra.mxu0 0.0
  %500 = vmatprep.subr.mxu0 0.0
  %501 = vmatpush1.msra.mxu0 0.0
  %502 = vmatprep.subr.mxu0 0.0
  %503 = vmatpush1.msra.mxu0 0.0
  %504 = vmatprep.subr.mxu0 0.0
  %505 = vmatpush1.msra.mxu0 0.0
  %506 = vmatprep.subr.mxu0 0.0
  %507 = vmatpush1.msra.mxu0 0.0
  %508 = vmatprep.subr.mxu0 0.0
  %509 = vmatpush1.msra.mxu0 0.0
  %510 = vmatprep.subr.mxu0 0.0
  %511 = vmatpush1.msra.mxu0 0.0
  %512 = vmatprep.subr.mxu0 0.0
  %513 = vmatpush1.msra.mxu0 0.0
  %514 = vmatprep.mubr.f32.mxu0 0.0
  %515 = vmatmul.mubr.f32.gmra.mrb[0].mxu0 %v448
  %v516 = vpop.f32.mrb[0].mxu0
  %v517 = vadd.f32 0.0, %v516
  %v518 = vpop.f32.mrb[0].mxu0
  %519 = vdwg.mxu0
  %v520 = vadd.f32 %v444, %v517
  %v521 = vtanh.pop %v520
  %v522 = vxor.u32 %v520, 2147483648
  %v523 = vmul.f32 %v522, 1.442695
  %v524 = vpow.pop %v523
  %v525 = vadd.f32 %v524, 1.0
  %v526 = vrcp.pop %v525
  %v527 = vmul.f32 1.0, %v526
  %v528 = vsel %vm22, %v521, %v527
  %v529 = vmul.f32 %v528, %v436
  %531 = vrot.lane.b32.xlu0 %v528, 64
  %v532 = vpop.permute.xlu0 %531
  %v534 = vmul.f32 %v528, %v532
  %536 = vrot.lane.b32.xlu0 %v534, 32
  %v537 = vpop.permute.xlu0 %536
  %v539 = vadd.f32 %v529, %v537
  %v540 = vtanh.pop %v539
  %542 = vrot.lane.b32.xlu0 %v540, 64
  %v543 = vpop.permute.xlu0 %542
  %v545 = vmul.f32 %v528, %v543
  %s546 = scalar_lea.vmem %s0, 40
  %v547 = vld [vmem:[%s546] sm:$0xff]
  %549 = vrot.lane.b32.xlu0 %v545, 32
  %v550 = vpop.permute.xlu0 %549
  %v551 = vsel %vm30, %v550, 0
  %553 = vmatprep.subr.mxu0 0.0
  %554 = vmatpush1.msra.mxu0 %v26
  %555 = vmatprep.subr.mxu0 0.0
  %556 = vmatpush1.msra.mxu0 %v27
  %557 = vmatprep.subr.mxu0 0.0
  %558 = vmatpush1.msra.mxu0 %v28
  %559 = vmatprep.subr.mxu0 0.0
  %560 = vmatpush1.msra.mxu0 %v29
  %561 = vmatprep.subr.mxu0 0.0
  %562 = vmatpush1.msra.mxu0 0.0
  %563 = vmatprep.subr.mxu0 0.0
  %564 = vmatpush1.msra.mxu0 0.0
  %565 = vmatprep.subr.mxu0 0.0
  %566 = vmatpush1.msra.mxu0 0.0
  %567 = vmatprep.subr.mxu0 0.0
  %568 = vmatpush1.msra.mxu0 0.0
  %569 = vmatprep.subr.mxu0 0.0
  %570 = vmatpush1.msra.mxu0 0.0
  %571 = vmatprep.subr.mxu0 0.0
  %572 = vmatpush1.msra.mxu0 0.0
  %573 = vmatprep.subr.mxu0 0.0
  %574 = vmatpush1.msra.mxu0 0.0
  %575 = vmatprep.subr.mxu0 0.0
  %576 = vmatpush1.msra.mxu0 0.0
  %577 = vmatprep.subr.mxu0 0.0
  %578 = vmatpush1.msra.mxu0 0.0
  %579 = vmatprep.subr.mxu0 0.0
  %580 = vmatpush1.msra.mxu0 0.0
  %581 = vmatprep.subr.mxu0 0.0
  %582 = vmatpush1.msra.mxu0 0.0
  %583 = vmatprep.subr.mxu0 0.0
  %584 = vmatpush1.msra.mxu0 0.0
  %585 = vmatprep.subr.mxu0 0.0
  %586 = vmatpush1.msra.mxu0 0.0
  %587 = vmatprep.subr.mxu0 0.0
  %588 = vmatpush1.msra.mxu0 0.0
  %589 = vmatprep.subr.mxu0 0.0
  %590 = vmatpush1.msra.mxu0 0.0
  %591 = vmatprep.subr.mxu0 0.0
  %592 = vmatpush1.msra.mxu0 0.0
  %593 = vmatprep.subr.mxu0 0.0
  %594 = vmatpush1.msra.mxu0 0.0
  %595 = vmatprep.subr.mxu0 0.0
  %596 = vmatpush1.msra.mxu0 0.0
  %597 = vmatprep.subr.mxu0 0.0
  %598 = vmatpush1.msra.mxu0 0.0
  %599 = vmatprep.subr.mxu0 0.0
  %600 = vmatpush1.msra.mxu0 0.0
  %601 = vmatprep.subr.mxu0 0.0
  %602 = vmatpush1.msra.mxu0 0.0
  %603 = vmatprep.subr.mxu0 0.0
  %604 = vmatpush1.msra.mxu0 0.0
  %605 = vmatprep.subr.mxu0 0.0
  %606 = vmatpush1.msra.mxu0 0.0
  %607 = vmatprep.subr.mxu0 0.0
  %608 = vmatpush1.msra.mxu0 0.0
  %609 = vmatprep.subr.mxu0 0.0
  %610 = vmatpush1.msra.mxu0 0.0
  %611 = vmatprep.subr.mxu0 0.0
  %612 = vmatpush1.msra.mxu0 0.0
  %613 = vmatprep.subr.mxu0 0.0
  %614 = vmatpush1.msra.mxu0 0.0
  %615 = vmatprep.subr.mxu0 0.0
  %616 = vmatpush1.msra.mxu0 0.0
  %617 = vmatprep.mubr.f32.mxu0 0.0
  %618 = vmatmul.mubr.f32.gmra.mrb[0].mxu0 %v551
  %v619 = vpop.f32.mrb[0].mxu0
  %v620 = vadd.f32 0.0, %v619
  %v621 = vpop.f32.mrb[0].mxu0
  %622 = vdwg.mxu0
  %v623 = vadd.f32 %v547, %v620
  %v624 = vtanh.pop %v623
  %v625 = vxor.u32 %v623, 2147483648
  %v626 = vmul.f32 %v625, 1.442695
  %v627 = vpow.pop %v626
  %v628 = vadd.f32 %v627, 1.0
  %v629 = vrcp.pop %v628
  %v630 = vmul.f32 1.0, %v629
  %v631 = vsel %vm22, %v624, %v630
  %v632 = vmul.f32 %v631, %v539
  %634 = vrot.lane.b32.xlu0 %v631, 64
  %v635 = vpop.permute.xlu0 %634
  %v637 = vmul.f32 %v631, %v635
  %639 = vrot.lane.b32.xlu0 %v637, 32
  %v640 = vpop.permute.xlu0 %639
  %v642 = vadd.f32 %v632, %v640
  %v643 = vtanh.pop %v642
  %645 = vrot.lane.b32.xlu0 %v643, 64
  %v646 = vpop.permute.xlu0 %645
  %v648 = vmul.f32 %v631, %v646
  %s649 = scalar_lea.vmem %s0, 48
  %v650 = vld [vmem:[%s649] sm:$0xff]
  %652 = vrot.lane.b32.xlu0 %v648, 32
  %v653 = vpop.permute.xlu0 %652
  %v654 = vsel %vm30, %v653, 0
  %656 = vmatprep.subr.mxu0 0.0
  %657 = vmatpush1.msra.mxu0 %v26
  %658 = vmatprep.subr.mxu0 0.0
  %659 = vmatpush1.msra.mxu0 %v27
  %660 = vmatprep.subr.mxu0 0.0
  %661 = vmatpush1.msra.mxu0 %v28
  %662 = vmatprep.subr.mxu0 0.0
  %663 = vmatpush1.msra.mxu0 %v29
  %664 = vmatprep.subr.mxu0 0.0
  %665 = vmatpush1.msra.mxu0 0.0
  %666 = vmatprep.subr.mxu0 0.0
  %667 = vmatpush1.msra.mxu0 0.0
  %668 = vmatprep.subr.mxu0 0.0
  %669 = vmatpush1.msra.mxu0 0.0
  %670 = vmatprep.subr.mxu0 0.0
  %671 = vmatpush1.msra.mxu0 0.0
  %672 = vmatprep.subr.mxu0 0.0
  %673 = vmatpush1.msra.mxu0 0.0
  %674 = vmatprep.subr.mxu0 0.0
  %675 = vmatpush1.msra.mxu0 0.0
  %676 = vmatprep.subr.mxu0 0.0
  %677 = vmatpush1.msra.mxu0 0.0
  %678 = vmatprep.subr.mxu0 0.0
  %679 = vmatpush1.msra.mxu0 0.0
  %680 = vmatprep.subr.mxu0 0.0
  %681 = vmatpush1.msra.mxu0 0.0
  %682 = vmatprep.subr.mxu0 0.0
  %683 = vmatpush1.msra.mxu0 0.0
  %684 = vmatprep.subr.mxu0 0.0
  %685 = vmatpush1.msra.mxu0 0.0
  %686 = vmatprep.subr.mxu0 0.0
  %687 = vmatpush1.msra.mxu0 0.0
  %688 = vmatprep.subr.mxu0 0.0
  %689 = vmatpush1.msra.mxu0 0.0
  %690 = vmatprep.subr.mxu0 0.0
  %691 = vmatpush1.msra.mxu0 0.0
  %692 = vmatprep.subr.mxu0 0.0
  %693 = vmatpush1.msra.mxu0 0.0
  %694 = vmatprep.subr.mxu0 0.0
  %695 = vmatpush1.msra.mxu0 0.0
  %696 = vmatprep.subr.mxu0 0.0
  %697 = vmatpush1.msra.mxu0 0.0
  %698 = vmatprep.subr.mxu0 0.0
  %699 = vmatpush1.msra.mxu0 0.0
  %700 = vmatprep.subr.mxu0 0.0
  %701 = vmatpush1.msra.mxu0 0.0
  %702 = vmatprep.subr.mxu0 0.0
  %703 = vmatpush1.msra.mxu0 0.0
  %704 = vmatprep.subr.mxu0 0.0
  %705 = vmatpush1.msra.mxu0 0.0
  %706 = vmatprep.subr.mxu0 0.0
  %707 = vmatpush1.msra.mxu0 0.0
  %708 = vmatprep.subr.mxu0 0.0
  %709 = vmatpush1.msra.mxu0 0.0
  %710 = vmatprep.subr.mxu0 0.0
  %711 = vmatpush1.msra.mxu0 0.0
  %712 = vmatprep.subr.mxu0 0.0
  %713 = vmatpush1.msra.mxu0 0.0
  %714 = vmatprep.subr.mxu0 0.0
  %715 = vmatpush1.msra.mxu0 0.0
  %716 = vmatprep.subr.mxu0 0.0
  %717 = vmatpush1.msra.mxu0 0.0
  %718 = vmatprep.subr.mxu0 0.0
  %719 = vmatpush1.msra.mxu0 0.0
  %720 = vmatprep.mubr.f32.mxu0 0.0
  %721 = vmatmul.mubr.f32.gmra.mrb[0].mxu0 %v654
  %v722 = vpop.f32.mrb[0].mxu0
  %v723 = vadd.f32 0.0, %v722
  %v724 = vpop.f32.mrb[0].mxu0
  %725 = vdwg.mxu0
  %v726 = vadd.f32 %v650, %v723
  %v727 = vtanh.pop %v726
  %v728 = vxor.u32 %v726, 2147483648
  %v729 = vmul.f32 %v728, 1.442695
  %v730 = vpow.pop %v729
  %v731 = vadd.f32 %v730, 1.0
  %v732 = vrcp.pop %v731
  %v733 = vmul.f32 1.0, %v732
  %v734 = vsel %vm22, %v727, %v733
  %v735 = vmul.f32 %v734, %v642
  %737 = vrot.lane.b32.xlu0 %v734, 64
  %v738 = vpop.permute.xlu0 %737
  %v740 = vmul.f32 %v734, %v738
  %742 = vrot.lane.b32.xlu0 %v740, 32
  %v743 = vpop.permute.xlu0 %742
  %v745 = vadd.f32 %v735, %v743
  %v746 = vtanh.pop %v745
  %748 = vrot.lane.b32.xlu0 %v746, 64
  %v749 = vpop.permute.xlu0 %748
  %v751 = vmul.f32 %v734, %v749
  %s752 = scalar_lea.vmem %s0, 56
  %v753 = vld [vmem:[%s752] sm:$0xff]
  %755 = vrot.lane.b32.xlu0 %v751, 32
  %v756 = vpop.permute.xlu0 %755
  %v757 = vsel %vm30, %v756, 0
  %759 = vmatprep.subr.mxu0 0.0
  %760 = vmatpush1.msra.mxu0 %v26
  %761 = vmatprep.subr.mxu0 0.0
  %762 = vmatpush1.msra.mxu0 %v27
  %763 = vmatprep.subr.mxu0 0.0
  %764 = vmatpush1.msra.mxu0 %v28
  %765 = vmatprep.subr.mxu0 0.0
  %766 = vmatpush1.msra.mxu0 %v29
  %767 = vmatprep.subr.mxu0 0.0
  %768 = vmatpush1.msra.mxu0 0.0
  %769 = vmatprep.subr.mxu0 0.0
  %770 = vmatpush1.msra.mxu0 0.0
  %771 = vmatprep.subr.mxu0 0.0
  %772 = vmatpush1.msra.mxu0 0.0
  %773 = vmatprep.subr.mxu0 0.0
  %774 = vmatpush1.msra.mxu0 0.0
  %775 = vmatprep.subr.mxu0 0.0
  %776 = vmatpush1.msra.mxu0 0.0
  %777 = vmatprep.subr.mxu0 0.0
  %778 = vmatpush1.msra.mxu0 0.0
  %779 = vmatprep.subr.mxu0 0.0
  %780 = vmatpush1.msra.mxu0 0.0
  %781 = vmatprep.subr.mxu0 0.0
  %782 = vmatpush1.msra.mxu0 0.0
  %783 = vmatprep.subr.mxu0 0.0
  %784 = vmatpush1.msra.mxu0 0.0
  %785 = vmatprep.subr.mxu0 0.0
  %786 = vmatpush1.msra.mxu0 0.0
  %787 = vmatprep.subr.mxu0 0.0
  %788 = vmatpush1.msra.mxu0 0.0
  %789 = vmatprep.subr.mxu0 0.0
  %790 = vmatpush1.msra.mxu0 0.0
  %791 = vmatprep.subr.mxu0 0.0
  %792 = vmatpush1.msra.mxu0 0.0
  %793 = vmatprep.subr.mxu0 0.0
  %794 = vmatpush1.msra.mxu0 0.0
  %795 = vmatprep.subr.mxu0 0.0
  %796 = vmatpush1.msra.mxu0 0.0
  %797 = vmatprep.subr.mxu0 0.0
  %798 = vmatpush1.msra.mxu0 0.0
  %799 = vmatprep.subr.mxu0 0.0
  %800 = vmatpush1.msra.mxu0 0.0
  %801 = vmatprep.subr.mxu0 0.0
  %802 = vmatpush1.msra.mxu0 0.0
  %803 = vmatprep.subr.mxu0 0.0
  %804 = vmatpush1.msra.mxu0 0.0
  %805 = vmatprep.subr.mxu0 0.0
  %806 = vmatpush1.msra.mxu0 0.0
  %807 = vmatprep.subr.mxu0 0.0
  %808 = vmatpush1.msra.mxu0 0.0
  %809 = vmatprep.subr.mxu0 0.0
  %810 = vmatpush1.msra.mxu0 0.0
  %811 = vmatprep.subr.mxu0 0.0
  %812 = vmatpush1.msra.mxu0 0.0
  %813 = vmatprep.subr.mxu0 0.0
  %814 = vmatpush1.msra.mxu0 0.0
  %815 = vmatprep.subr.mxu0 0.0
  %816 = vmatpush1.msra.mxu0 0.0
  %817 = vmatprep.subr.mxu0 0.0
  %818 = vmatpush1.msra.mxu0 0.0
  %819 = vmatprep.subr.mxu0 0.0
  %820 = vmatpush1.msra.mxu0 0.0
  %821 = vmatprep.subr.mxu0 0.0
  %822 = vmatpush1.msra.mxu0 0.0
  %823 = vmatprep.mubr.f32.mxu0 0.0
  %824 = vmatmul.mubr.f32.gmra.mrb[0].mxu0 %v757
  %v825 = vpop.f32.mrb[0].mxu0
  %v826 = vadd.f32 0.0, %v825
  %v827 = vpop.f32.mrb[0].mxu0
  %828 = vdwg.mxu0
  %v829 = vadd.f32 %v753, %v826
  %v830 = vtanh.pop %v829
  %v831 = vxor.u32 %v829, 2147483648
  %v832 = vmul.f32 %v831, 1.442695
  %v833 = vpow.pop %v832
  %v834 = vadd.f32 %v833, 1.0
  %v835 = vrcp.pop %v834
  %v836 = vmul.f32 1.0, %v835
  %v837 = vsel %vm22, %v830, %v836
  %v838 = vmul.f32 %v837, %v745
  %840 = vrot.lane.b32.xlu0 %v837, 64
  %v841 = vpop.permute.xlu0 %840
  %v843 = vmul.f32 %v837, %v841
  %845 = vrot.lane.b32.xlu0 %v843, 32
  %v846 = vpop.permute.xlu0 %845
  %v848 = vadd.f32 %v838, %v846
  %v849 = vtanh.pop %v848
  %851 = vrot.lane.b32.xlu0 %v849, 64
  %v852 = vpop.permute.xlu0 %851
  %v854 = vmul.f32 %v837, %v852
  %856 = vrot.lane.b32.xlu0 %v854, 32
  %v857 = vpop.permute.xlu0 %856
  %859 = vst.msk [vmem:[#allocation2] sm:$0xff] %vm30, %v857
  %861 = vrot.lane.b32.xlu0 %v848, 96
  %v862 = vpop.permute.xlu0 %861
  %864 = vst.msk [vmem:[#allocation3] sm:$0xff] %vm30, %v862
  // Predicated region
  $region14: #{lstm_encoder_last.1} parent=0 // pred_check
    %p865 = pneg %p11
  $region15: #{lstm_encoder_last.1} parent=0 // pred_check_branch
    %867 = sbr.rel (%p865) target = $region17
  $region16: #{lstm_encoder_last.1} parent=0 // pred_region
    %868 = vst.msk [vmem:[%s2] sm:$0xff] %vm30, %v857
  $region17: #{lstm_encoder_last.1} parent=0 // pred_fallthru
    _
  // Predicated region
  $region18: #{lstm_encoder_last.1} parent=0 // pred_check
    _
  $region19: #{lstm_encoder_last.1} parent=0 // pred_check_branch
    %870 = sbr.rel (0) target = $region21
  $region20: #{lstm_encoder_last.1} parent=0 // pred_region
    _
  $region21: #{lstm_encoder_last.1} parent=0 // pred_fallthru
    _
  // Predicated region
  $region22: #{lstm_encoder_last.1} parent=0 // pred_check
    _
  $region23: #{lstm_encoder_last.1} parent=0 // pred_check_branch
    %872 = sbr.rel (0) target = $region25
  $region24: #{lstm_encoder_last.1} parent=0 // pred_region
    _
  $region25: #{lstm_encoder_last.1} parent=0 // pred_fallthru
    _

</llo_original>
